<compile_context>
chip_gen: v5e
topology: v5e:2x2
jax: 0.10.0
libtpu: 0.0.40
codegen_flags: <defaults>
</compile_context>

<pallas_src>
import functools

import jax
import jax.numpy as jnp
from jax.experimental import pallas as pl
from jax.experimental.pallas import tpu as pltpu


# ----------------------------------------------------------------------------
# In-kernel building blocks
# ----------------------------------------------------------------------------
def _conv_stage(h, t_ref, ss_ref):
  """Conv1d(k=3,s=2,p=1) + BatchNorm1d(eval) + ReLU + MaxPool1d(2).

  im2col is pre-folded into `t` (shape (Cin*L_in, 2*Cout*Lp)); the left column
  half produces the even conv positions of each pool pair, the right half the
  odd ones, so MaxPool1d(2) is a max of the two contiguous halves.
  Output columns are channel-major (co*Lp + p) == PyTorch NCL flatten order.
  """
  z = jnp.dot(h.astype(jnp.bfloat16), t_ref[...],
              preferred_element_type=jnp.float32)
  z = jnp.maximum(z * ss_ref[0:1, :] + ss_ref[1:2, :], 0.0)   # folded BN + ReLU
  half = z.shape[1] // 2
  return jnp.maximum(z[:, :half], z[:, half:])                # MaxPool1d(2)


def _mlp(h, w1_ref, b1_ref, w2_ref, b2_ref):
  """Linear -> ReLU -> (Dropout = id) -> Linear (output lane-padded to 128)."""
  h = jnp.dot(h.astype(jnp.bfloat16), w1_ref[...],
              preferred_element_type=jnp.float32) + b1_ref[...]
  h = jnp.maximum(h, 0.0)
  return jnp.dot(h.astype(jnp.bfloat16), w2_ref[...],
                 preferred_element_type=jnp.float32) + b2_ref[...]


def _layernorm(v, g=None, b=None, eps=1e-5):
  mu = jnp.mean(v, axis=-1, keepdims=True)
  var = jnp.mean((v - mu) * (v - mu), axis=-1, keepdims=True)
  vn = (v - mu) * jax.lax.rsqrt(var + eps)
  return vn if g is None else vn * g + b


def _gelu_tanh(v):
  # tanh-based GELU -> EUP slot (free vs. ~10 VALU ops of a rational erf).
  # TODO(synk): PyTorch nn.GELU() default is erf-based; tanh form differs <1e-3.
  c = 0.7978845608028654  # sqrt(2/pi)
  return 0.5 * v * (1.0 + jnp.tanh(c * (v + 0.044715 * v * v * v)))


# ----------------------------------------------------------------------------
# Fused kernels
# ----------------------------------------------------------------------------
def fused_fc_kernel(x_ref, t1, ss1, t2, ss2, t3, ss3, w1, b1, w2, b2, out_ref):
  h = _conv_stage(x_ref[...], t1, ss1)
  h = _conv_stage(h, t2, ss2)
  h = _conv_stage(h, t3, ss3)                 # (TB, F), PyTorch flatten order
  out_ref[...] = _mlp(h, w1, b1, w2, b2)      # fc


def fused_attn_kernel(x_ref, s_ref, t1, ss1, t2, ss2, t3, ss3,
                      wf, ws, hv, wvo, w1, b1, w2, b2, out_ref):
  # hv rows: 0:bf 1:g_f 2:b_f 3:bs 4:g_s 5:b_s 6:bvo 7:shap_scale
  h = _conv_stage(x_ref[...], t1, ss1)
  h = _conv_stage(h, t2, ss2)
  feat = _conv_stage(h, t3, ss3)                                  # (TB, F)
  xn = _layernorm(feat)                     # input_norm (affine folded into wf)
  xp = jnp.dot(xn.astype(jnp.bfloat16), wf[...],
               preferred_element_type=jnp.float32) + hv[0:1, :]
  xp = _layernorm(_gelu_tanh(xp), hv[1:2, :], hv[2:3, :])         # feature_proj
  sp = jnp.dot(s_ref[...], ws[...],
               preferred_element_type=jnp.float32) + hv[3:4, :]
  sp = _layernorm(sp, hv[4:5, :], hv[5:6, :])            # shap_proj (Dropout=id)
  xc = xp * (1.0 + hv[7:8, :] * jax.nn.sigmoid(sp))               # shap gating
  # MultiheadAttention, seq_len == 1, eval: softmax(single logit) == 1, so
  # attn == out_proj(v_proj(xc)); wvo/bvo are that product pre-folded host-side.
  attn = jnp.dot(xc.astype(jnp.bfloat16), wvo[...],
                 preferred_element_type=jnp.float32) + hv[6:7, :]
  ctx = _layernorm(attn + xp)           # layer_norm (affine folded into fc1[0])
  out_ref[...] = _mlp(ctx, w1, b1, w2, b2)                        # fc1


# ----------------------------------------------------------------------------
# Wrapper-side parameter folding (plain JAX, runs once per jitted call)
# ----------------------------------------------------------------------------
def _round_up(n, m):
  return -(-n // m) * m


def _fold_conv(conv_params, l_in, eps=1e-5):
  """Fold im2col + BN into (T, scale/shift) for one conv+BN+ReLU+pool stage."""
  w, b, gamma, beta, mean, var = conv_params          # w: (Cout, Cin, 3) PyTorch
  cout, cin, k = w.shape
  lp = l_in // 4                                      # length after conv(s=2)+pool(2)
  i_idx = jnp.arange(l_in)
  rows0 = 4 * jnp.arange(lp)
  halves = []
  for base in (-1, 1):            # even / odd conv positions of each pool pair
    acc = jnp.zeros((cin, l_in, cout, lp), jnp.float32)
    for kk in range(k):
      sel = (i_idx[:, None] == (rows0[None, :] + base + kk)).astype(jnp.float32)
      acc = acc + jnp.einsum('oc,lp->clop', w[:, :, kk], sel)
    halves.append(acc.reshape(cin * l_in, cout * lp))
  t = jnp.concatenate(halves, axis=1).astype(jnp.bfloat16)   # (Cin*L_in, 2*Cout*Lp)
  scale = gamma / jnp.sqrt(var + eps)
  shift = beta + scale * (b - mean)                          # conv bias folded in
  ss = jnp.stack([jnp.tile(jnp.repeat(scale, lp), 2),
                  jnp.tile(jnp.repeat(shift, lp), 2)], axis=0)  # (2, 2*Cout*Lp)
  return t, ss


def _pad_mlp(w1, b1, w2, b2, out_pad):
  """bf16 weights; zero-pad the final Linear to a lane-dense (…,128k) output."""
  n = w2.shape[1]
  w2p = jnp.pad(w2, ((0, 0), (0, out_pad - n))).astype(jnp.bfloat16)
  b2p = jnp.pad(b2, ((0, 0), (0, out_pad - n)))
  return w1.astype(jnp.bfloat16), b1, w2p, b2p


def _fold_attn(a, fc1):
  """Host-side algebraic folds for the SHAP-attention path.

  - input_norm affine (g_in, b_in) folded into feature_proj[0] weight/bias.
  - MHA v_proj @ out_proj pre-multiplied into one (H,H) matmul (seq_len == 1).
  - final layer_norm affine (g_o, b_o) folded into fc1[0] weight/bias.
  """
  w1, b1, w2, b2 = fc1
  wf = a["g_in"].reshape(-1, 1) * a["wf"]                   # (F, H)
  bf = a["b_in"] @ a["wf"] + a["bf"]                        # (1, H)
  wvo = a["wv"] @ a["wo"]                                   # (H, H)
  bvo = a["bv"] @ a["wo"] + a["bo"]                         # (1, H)
  w1f = a["g_o"].reshape(-1, 1) * w1                        # (H, 256)
  b1f = a["b_o"] @ w1 + b1                                  # (1, 256)
  hv = jnp.concatenate(
      [bf, a["g_f"], a["b_f"], a["bs"], a["g_s"], a["b_s"], bvo,
       jnp.broadcast_to(a["shap_scale"], bf.shape)], axis=0)   # (8, H)
  return (wf.astype(jnp.bfloat16), a["ws"].astype(jnp.bfloat16), hv,
          wvo.astype(jnp.bfloat16), w1f, b1f, w2, b2)


@functools.partial(jax.jit, static_argnames=("use_shap",))
def conv1dcnn_forward(params, x, shap_weights=None, use_shap=False):
  """Conv1DCNN.forward (eval).  x: (B, input_size) float32, input_size % 64 == 0."""
  B, L = x.shape
  out_dim = params["fc"][3].shape[1]
  out_pad = _round_up(out_dim, 128)

  t1, ss1 = _fold_conv(params["conv1"], L)
  t2, ss2 = _fold_conv(params["conv2"], L // 4)
  t3, ss3 = _fold_conv(params["conv3"], L // 16)

  tile_b = 256 if B > 512 else _round_up(B, 8)     # >=8 sublanes per tile
  bp = _round_up(B, tile_b)
  xb = (jnp.pad(x, ((0, bp - B), (0, 0))) if bp != B else x).astype(jnp.bfloat16)

  row = lambda n: pl.BlockSpec((tile_b, n), lambda i: (i, 0))
  full = lambda a: pl.BlockSpec(a.shape, lambda i: (0, 0))
  cparams = pltpu.CompilerParams(dimension_semantics=("parallel",),
                                 vmem_limit_bytes=48 * 1024 * 1024)
  grid = (bp // tile_b,)

  if use_shap:
    if shap_weights.ndim > 2:
      shap_weights = shap_weights.mean(axis=0)
    sb = (jnp.pad(shap_weights, ((0, bp - B), (0, 0)))
          if bp != B else shap_weights).astype(jnp.bfloat16)
    wf, ws, hv, wvo, w1f, b1f, w2, b2 = _fold_attn(params["attn"], params["fc1"])
    w1p, b1p, w2p, b2p = _pad_mlp(w1f, b1f, w2, b2, out_pad)
    args = (xb, sb, t1, ss1, t2, ss2, t3, ss3, wf, ws, hv, wvo,
            w1p, b1p, w2p, b2p)
    in_specs = [row(L), row(L)] + [full(v) for v in args[2:]]
    kern = fused_attn_kernel
  else:
    w1p, b1p, w2p, b2p = _pad_mlp(*params["fc"], out_pad)
    args = (xb, t1, ss1, t2, ss2, t3, ss3, w1p, b1p, w2p, b2p)
    in_specs = [row(L)] + [full(v) for v in args[1:]]
    kern = fused_fc_kernel

  out = pl.pallas_call(
      kern,
      grid=grid,
      out_shape=jax.ShapeDtypeStruct((bp, out_pad), jnp.float32),
      in_specs=in_specs,
      out_specs=pl.BlockSpec((tile_b, out_pad), lambda i: (i, 0)),
      compiler_params=cparams,
  )(*args)
  return out[:B, :out_dim]


# ----------------------------------------------------------------------------
# Deterministic synthetic parameter init (shapes from Conv1DCNN.__init__)
# ----------------------------------------------------------------------------
def _linear(key, fan_in, fan_out):
  kw, kb = jax.random.split(key)
  w = jax.random.normal(kw, (fan_in, fan_out), jnp.float32) / jnp.sqrt(float(fan_in))
  b = 0.01 * jax.random.normal(kb, (1, fan_out), jnp.float32)
  return w, b


def _conv_bn(key, cin, cout):
  ks = jax.random.split(key, 6)
  w = jax.random.normal(ks[0], (cout, cin, 3), jnp.float32) / jnp.sqrt(float(cin * 3))
  b = 0.01 * jax.random.normal(ks[1], (cout,), jnp.float32)
  gamma = 1.0 + 0.1 * jax.random.normal(ks[2], (cout,), jnp.float32)
  beta = 0.1 * jax.random.normal(ks[3], (cout,), jnp.float32)
  mean = 0.1 * jax.random.normal(ks[4], (cout,), jnp.float32)   # BN running stats
  var = 1.0 + 0.1 * jax.random.uniform(ks[5], (cout,), jnp.float32)
  return (w, b, gamma, beta, mean, var)


def init_params(key, input_size, hidden_size, output_size):
  flattened_size = 64 * (input_size // 64)
  ks = iter(jax.random.split(key, 16))
  p = {}
  p["conv1"] = _conv_bn(next(ks), 1, 16)
  p["conv2"] = _conv_bn(next(ks), 16, 32)
  p["conv3"] = _conv_bn(next(ks), 32, 64)
  p["fc"] = (*_linear(next(ks), flattened_size, 256), *_linear(next(ks), 256, output_size))
  p["fc1"] = (*_linear(next(ks), hidden_size, 256), *_linear(next(ks), 256, output_size))

  H = hidden_size
  wf, bf = _linear(next(ks), flattened_size, H)     # feature_proj[0]
  ws, bs = _linear(next(ks), input_size, H)         # shap_proj[0]  (shap_dim = input_size)
  wv, bv = _linear(next(ks), H, H)                  # MHA value projection (q/k unused)
  wo, bo = _linear(next(ks), H, H)                  # MHA out_proj
  ones = lambda d: jnp.ones((1, d), jnp.float32)
  zeros = lambda d: jnp.zeros((1, d), jnp.float32)
  p["attn"] = dict(
      g_in=ones(flattened_size), b_in=zeros(flattened_size),
      wf=wf, bf=bf, g_f=ones(H), b_f=zeros(H),
      ws=ws, bs=bs, g_s=ones(H), b_s=zeros(H),
      shap_scale=jnp.ones((1, 1), jnp.float32),
      wv=wv, bv=bv, wo=wo, bo=bo,
      g_o=ones(H), b_o=zeros(H),
  )
  return p


# ----------------------------------------------------------------------------
if __name__ == "__main__":
  input_size, hidden_size, output_size = 64, 32, 8   # input_size % 64 == 0
  B = 2
  key = jax.random.PRNGKey(0)
  k_par, k_x, k_s = jax.random.split(key, 3)

  params = init_params(k_par, input_size, hidden_size, output_size)
  x = jax.random.normal(k_x, (B, input_size), jnp.float32)
  shap = jax.random.normal(k_s, (B, input_size), jnp.float32)

  y_fc = conv1dcnn_forward(params, x)                          # shap_weights=None path
  y_attn = conv1dcnn_forward(params, x, shap, use_shap=True)   # SHAP-attention path
  jax.block_until_ready((y_fc, y_attn))

  assert y_fc.shape == (B, output_size), y_fc.shape
  assert y_attn.shape == (B, output_size), y_attn.shape
  assert jnp.all(jnp.isfinite(y_fc)) and jnp.all(jnp.isfinite(y_attn))
  print("KERNEL_OK")
</pallas_src>

<mosaic_0001>
module attributes {stable_mosaic.version = 11 : i64} {
  func.func @fused_fc_kernel(%arg0: i32, %arg1: memref<8x64xbf16, #tpu.memory_space<vmem>>, %arg2: memref<64x512xbf16, #tpu.memory_space<vmem>>, %arg3: memref<2x512xf32, #tpu.memory_space<vmem>>, %arg4: memref<256x256xbf16, #tpu.memory_space<vmem>>, %arg5: memref<2x256xf32, #tpu.memory_space<vmem>>, %arg6: memref<128x128xbf16, #tpu.memory_space<vmem>>, %arg7: memref<2x128xf32, #tpu.memory_space<vmem>>, %arg8: memref<64x256xbf16, #tpu.memory_space<vmem>>, %arg9: memref<1x256xf32, #tpu.memory_space<vmem>>, %arg10: memref<256x128xbf16, #tpu.memory_space<vmem>>, %arg11: memref<1x128xf32, #tpu.memory_space<vmem>>, %arg12: memref<8x128xf32, #tpu.memory_space<vmem>>) attributes {dimension_semantics = [#tpu.dimension_semantics<parallel>], iteration_bounds = array<i64: 1>, scalar_prefetch = 0 : i64, scratch_operands = 0 : i64, tpu.core_type = #tpu.core_type<tc>, window_params = [{transform_indices = @transform_0, window_bounds = array<i64: 8, 64>}, {pipeline_mode = #tpu.pipeline_mode<synchronous>, transform_indices = @transform_1, window_bounds = array<i64: 64, 512>}, {pipeline_mode = #tpu.pipeline_mode<synchronous>, transform_indices = @transform_2, window_bounds = array<i64: 2, 512>}, {pipeline_mode = #tpu.pipeline_mode<synchronous>, transform_indices = @transform_3, window_bounds = array<i64: 256, 256>}, {pipeline_mode = #tpu.pipeline_mode<synchronous>, transform_indices = @transform_4, window_bounds = array<i64: 2, 256>}, {pipeline_mode = #tpu.pipeline_mode<synchronous>, transform_indices = @transform_5, window_bounds = array<i64: 128, 128>}, {pipeline_mode = #tpu.pipeline_mode<synchronous>, transform_indices = @transform_6, window_bounds = array<i64: 2, 128>}, {pipeline_mode = #tpu.pipeline_mode<synchronous>, transform_indices = @transform_7, window_bounds = array<i64: 64, 256>}, {pipeline_mode = #tpu.pipeline_mode<synchronous>, transform_indices = @transform_8, window_bounds = array<i64: 1, 256>}, {pipeline_mode = #tpu.pipeline_mode<synchronous>, transform_indices = @transform_9, window_bounds = array<i64: 256, 128>}, {pipeline_mode = #tpu.pipeline_mode<synchronous>, transform_indices = @transform_10, window_bounds = array<i64: 1, 128>}, {transform_indices = @transform_11, window_bounds = array<i64: 8, 128>}]} {
    %c0 = arith.constant 0 : index
    %c0_0 = arith.constant 0 : index
    %0 = vector.load %arg1[%c0, %c0_0] : memref<8x64xbf16, #tpu.memory_space<vmem>>, vector<8x64xbf16>
    %c0_1 = arith.constant 0 : index
    %c0_2 = arith.constant 0 : index
    %1 = vector.load %arg2[%c0_1, %c0_2] : memref<64x512xbf16, #tpu.memory_space<vmem>>, vector<64x512xbf16>
    %cst = arith.constant dense<0.000000e+00> : vector<8x512xf32>
    %2 = tpu.matmul %0, %1, %cst {dimension_numbers = #tpu.dot_dimension_numbers<[1], [0], [0], [1], [0, 0, 1, 1], [], []>} : vector<8x64xbf16>, vector<64x512xbf16>, vector<8x512xf32> -> vector<8x512xf32>
    %c0_3 = arith.constant 0 : index
    %c0_4 = arith.constant 0 : index
    %3 = vector.load %arg3[%c0_3, %c0_4] : memref<2x512xf32, #tpu.memory_space<vmem>>, vector<1x512xf32>
    %4 = vector.broadcast %3 : vector<1x512xf32> to vector<8x512xf32>
    %5 = arith.mulf %2, %4 : vector<8x512xf32>
    %c1 = arith.constant 1 : index
    %c0_5 = arith.constant 0 : index
    %6 = vector.load %arg3[%c1, %c0_5] : memref<2x512xf32, #tpu.memory_space<vmem>>, vector<1x512xf32>
    %7 = vector.broadcast %6 : vector<1x512xf32> to vector<8x512xf32>
    %8 = arith.addf %5, %7 : vector<8x512xf32>
    %cst_6 = arith.constant 0.000000e+00 : f32
    %9 = vector.broadcast %cst_6 : f32 to vector<8x512xf32>
    %10 = arith.maximumf %8, %9 : vector<8x512xf32>
    %11 = vector.extract_strided_slice %10 {offsets = [0, 0], sizes = [8, 256], strides = [1, 1]} : vector<8x512xf32> to vector<8x256xf32>
    %12 = vector.extract_strided_slice %10 {offsets = [0, 256], sizes = [8, 256], strides = [1, 1]} : vector<8x512xf32> to vector<8x256xf32>
    %13 = arith.maximumf %11, %12 : vector<8x256xf32>
    %14 = arith.truncf %13 : vector<8x256xf32> to vector<8x256xbf16>
    %c0_7 = arith.constant 0 : index
    %c0_8 = arith.constant 0 : index
    %15 = vector.load %arg4[%c0_7, %c0_8] : memref<256x256xbf16, #tpu.memory_space<vmem>>, vector<256x256xbf16>
    %cst_9 = arith.constant dense<0.000000e+00> : vector<8x256xf32>
    %16 = tpu.matmul %14, %15, %cst_9 {dimension_numbers = #tpu.dot_dimension_numbers<[1], [0], [0], [1], [0, 0, 1, 1], [], []>} : vector<8x256xbf16>, vector<256x256xbf16>, vector<8x256xf32> -> vector<8x256xf32>
    %c0_10 = arith.constant 0 : index
    %c0_11 = arith.constant 0 : index
    %17 = vector.load %arg5[%c0_10, %c0_11] : memref<2x256xf32, #tpu.memory_space<vmem>>, vector<1x256xf32>
    %18 = vector.broadcast %17 : vector<1x256xf32> to vector<8x256xf32>
    %19 = arith.mulf %16, %18 : vector<8x256xf32>
    %c1_12 = arith.constant 1 : index
    %c0_13 = arith.constant 0 : index
    %20 = vector.load %arg5[%c1_12, %c0_13] : memref<2x256xf32, #tpu.memory_space<vmem>>, vector<1x256xf32>
    %21 = vector.broadcast %20 : vector<1x256xf32> to vector<8x256xf32>
    %22 = arith.addf %19, %21 : vector<8x256xf32>
    %cst_14 = arith.constant 0.000000e+00 : f32
    %23 = vector.broadcast %cst_14 : f32 to vector<8x256xf32>
    %24 = arith.maximumf %22, %23 : vector<8x256xf32>
    %25 = vector.extract_strided_slice %24 {offsets = [0, 0], sizes = [8, 128], strides = [1, 1]} : vector<8x256xf32> to vector<8x128xf32>
    %26 = vector.extract_strided_slice %24 {offsets = [0, 128], sizes = [8, 128], strides = [1, 1]} : vector<8x256xf32> to vector<8x128xf32>
    %27 = arith.maximumf %25, %26 : vector<8x128xf32>
    %28 = arith.truncf %27 : vector<8x128xf32> to vector<8x128xbf16>
    %c0_15 = arith.constant 0 : index
    %c0_16 = arith.constant 0 : index
    %29 = vector.load %arg6[%c0_15, %c0_16] : memref<128x128xbf16, #tpu.memory_space<vmem>>, vector<128x128xbf16>
    %cst_17 = arith.constant dense<0.000000e+00> : vector<8x128xf32>
    %30 = tpu.matmul %28, %29, %cst_17 {dimension_numbers = #tpu.dot_dimension_numbers<[1], [0], [0], [1], [0, 0, 1, 1], [], []>} : vector<8x128xbf16>, vector<128x128xbf16>, vector<8x128xf32> -> vector<8x128xf32>
    %c0_18 = arith.constant 0 : index
    %c0_19 = arith.constant 0 : index
    %31 = vector.load %arg7[%c0_18, %c0_19] : memref<2x128xf32, #tpu.memory_space<vmem>>, vector<1x128xf32>
    %32 = vector.broadcast %31 : vector<1x128xf32> to vector<8x128xf32>
    %33 = arith.mulf %30, %32 : vector<8x128xf32>
    %c1_20 = arith.constant 1 : index
    %c0_21 = arith.constant 0 : index
    %34 = vector.load %arg7[%c1_20, %c0_21] : memref<2x128xf32, #tpu.memory_space<vmem>>, vector<1x128xf32>
    %35 = vector.broadcast %34 : vector<1x128xf32> to vector<8x128xf32>
    %36 = arith.addf %33, %35 : vector<8x128xf32>
    %cst_22 = arith.constant 0.000000e+00 : f32
    %37 = vector.broadcast %cst_22 : f32 to vector<8x128xf32>
    %38 = arith.maximumf %36, %37 : vector<8x128xf32>
    %39 = vector.extract_strided_slice %38 {offsets = [0, 0], sizes = [8, 64], strides = [1, 1]} : vector<8x128xf32> to vector<8x64xf32>
    %40 = vector.extract_strided_slice %38 {offsets = [0, 64], sizes = [8, 64], strides = [1, 1]} : vector<8x128xf32> to vector<8x64xf32>
    %41 = arith.maximumf %39, %40 : vector<8x64xf32>
    %42 = arith.truncf %41 : vector<8x64xf32> to vector<8x64xbf16>
    %c0_23 = arith.constant 0 : index
    %c0_24 = arith.constant 0 : index
    %43 = vector.load %arg8[%c0_23, %c0_24] : memref<64x256xbf16, #tpu.memory_space<vmem>>, vector<64x256xbf16>
    %cst_25 = arith.constant dense<0.000000e+00> : vector<8x256xf32>
    %44 = tpu.matmul %42, %43, %cst_25 {dimension_numbers = #tpu.dot_dimension_numbers<[1], [0], [0], [1], [0, 0, 1, 1], [], []>} : vector<8x64xbf16>, vector<64x256xbf16>, vector<8x256xf32> -> vector<8x256xf32>
    %c0_26 = arith.constant 0 : index
    %c0_27 = arith.constant 0 : index
    %45 = vector.load %arg9[%c0_26, %c0_27] : memref<1x256xf32, #tpu.memory_space<vmem>>, vector<1x256xf32>
    %46 = vector.broadcast %45 : vector<1x256xf32> to vector<8x256xf32>
    %47 = arith.addf %44, %46 : vector<8x256xf32>
    %cst_28 = arith.constant 0.000000e+00 : f32
    %48 = vector.broadcast %cst_28 : f32 to vector<8x256xf32>
    %49 = arith.maximumf %47, %48 : vector<8x256xf32>
    %50 = arith.truncf %49 : vector<8x256xf32> to vector<8x256xbf16>
    %c0_29 = arith.constant 0 : index
    %c0_30 = arith.constant 0 : index
    %51 = vector.load %arg10[%c0_29, %c0_30] : memref<256x128xbf16, #tpu.memory_space<vmem>>, vector<256x128xbf16>
    %cst_31 = arith.constant dense<0.000000e+00> : vector<8x128xf32>
    %52 = tpu.matmul %50, %51, %cst_31 {dimension_numbers = #tpu.dot_dimension_numbers<[1], [0], [0], [1], [0, 0, 1, 1], [], []>} : vector<8x256xbf16>, vector<256x128xbf16>, vector<8x128xf32> -> vector<8x128xf32>
    %c0_32 = arith.constant 0 : index
    %c0_33 = arith.constant 0 : index
    %53 = vector.load %arg11[%c0_32, %c0_33] : memref<1x128xf32, #tpu.memory_space<vmem>>, vector<1x128xf32>
    %54 = vector.broadcast %53 : vector<1x128xf32> to vector<8x128xf32>
    %55 = arith.addf %52, %54 : vector<8x128xf32>
    %c0_34 = arith.constant 0 : index
    %c0_35 = arith.constant 0 : index
    %56 = vector.load %arg12[%c0_34, %c0_35] : memref<8x128xf32, #tpu.memory_space<vmem>>, vector<8x128xf32>
    tpu.vector_store %arg12[%c0_34, %c0_35], %55 {strides = array<i32>} : memref<8x128xf32, #tpu.memory_space<vmem>>, vector<8x128xf32>,
    return
  }
  func.func @transform_0(%arg0: i32) -> (i32, i32) {
    %c0_i32 = arith.constant 0 : i32
    %c0_i32_0 = arith.constant 0 : i32
    return %arg0, %c0_i32 : i32, i32
  }
  func.func @transform_1(%arg0: i32) -> (i32, i32) {
    %c0_i32 = arith.constant 0 : i32
    %c0_i32_0 = arith.constant 0 : i32
    %c0_i32_1 = arith.constant 0 : i32
    return %c0_i32, %c0_i32_0 : i32, i32
  }
  func.func @transform_2(%arg0: i32) -> (i32, i32) {
    %c0_i32 = arith.constant 0 : i32
    %c0_i32_0 = arith.constant 0 : i32
    %c0_i32_1 = arith.constant 0 : i32
    return %c0_i32, %c0_i32_0 : i32, i32
  }
  func.func @transform_3(%arg0: i32) -> (i32, i32) {
    %c0_i32 = arith.constant 0 : i32
    %c0_i32_0 = arith.constant 0 : i32
    %c0_i32_1 = arith.constant 0 : i32
    return %c0_i32, %c0_i32_0 : i32, i32
  }
  func.func @transform_4(%arg0: i32) -> (i32, i32) {
    %c0_i32 = arith.constant 0 : i32
    %c0_i32_0 = arith.constant 0 : i32
    %c0_i32_1 = arith.constant 0 : i32
    return %c0_i32, %c0_i32_0 : i32, i32
  }
  func.func @transform_5(%arg0: i32) -> (i32, i32) {
    %c0_i32 = arith.constant 0 : i32
    %c0_i32_0 = arith.constant 0 : i32
    %c0_i32_1 = arith.constant 0 : i32
    return %c0_i32, %c0_i32_0 : i32, i32
  }
  func.func @transform_6(%arg0: i32) -> (i32, i32) {
    %c0_i32 = arith.constant 0 : i32
    %c0_i32_0 = arith.constant 0 : i32
    %c0_i32_1 = arith.constant 0 : i32
    return %c0_i32, %c0_i32_0 : i32, i32
  }
  func.func @transform_7(%arg0: i32) -> (i32, i32) {
    %c0_i32 = arith.constant 0 : i32
    %c0_i32_0 = arith.constant 0 : i32
    %c0_i32_1 = arith.constant 0 : i32
    return %c0_i32, %c0_i32_0 : i32, i32
  }
  func.func @transform_8(%arg0: i32) -> (i32, i32) {
    %c0_i32 = arith.constant 0 : i32
    %c0_i32_0 = arith.constant 0 : i32
    %c0_i32_1 = arith.constant 0 : i32
    return %c0_i32, %c0_i32_0 : i32, i32
  }
  func.func @transform_9(%arg0: i32) -> (i32, i32) {
    %c0_i32 = arith.constant 0 : i32
    %c0_i32_0 = arith.constant 0 : i32
    %c0_i32_1 = arith.constant 0 : i32
    return %c0_i32, %c0_i32_0 : i32, i32
  }
  func.func @transform_10(%arg0: i32) -> (i32, i32) {
    %c0_i32 = arith.constant 0 : i32
    %c0_i32_0 = arith.constant 0 : i32
    %c0_i32_1 = arith.constant 0 : i32
    return %c0_i32, %c0_i32_0 : i32, i32
  }
  func.func @transform_11(%arg0: i32) -> (i32, i32) {
    %c0_i32 = arith.constant 0 : i32
    %c0_i32_0 = arith.constant 0 : i32
    return %arg0, %c0_i32 : i32, i32
  }
}

</mosaic_0001>

<llo_original>
// kernel: tile.33
$region0: #{tile.33}
  %s0 = inlined_call_operand.vmem [shape: f32[32,4], index: 0, kind: input, shape index: {}]
  %s1 = inlined_call_operand.vmem [shape: f32[128], index: 1, kind: output, shape index: {}]
  $region1: #{tile.33} parent=0
    #allocation0 [shape = 'u8[4096]{0}', space=vmem, size = 0x1000, scoped, tag = 'scoped mem for output reshape']
    %v2 = vld [vmem:[%s0] sm:$0x1]
    %vm3 = vcmask 31744
    %4 = vst.msk [vmem:[#allocation0] sm:$0x1] %vm3, %v2
    %s5 = scalar_lea.vmem %s0, 31
    %v6 = vld [vmem:[%s5] sm:$0x1]
    %7 = vrot.lane.b32.xlu0 %v6, 124
    %v8 = vpop.permute.xlu0 %7
    %vm9 = vcmask 1048544
    %10 = vst.msk [vmem:[#allocation0] sm:$0x1] %vm9, %v8
    %s11 = scalar_lea.vmem %s0, 30
    %v12 = vld [vmem:[%s11] sm:$0x1]
    %13 = vrot.lane.b32.xlu0 %v12, 120
    %v14 = vpop.permute.xlu0 %13
    %vm15 = vcmask 1015744
    %16 = vst.msk [vmem:[#allocation0] sm:$0x1] %vm15, %v14
    %s17 = scalar_lea.vmem %s0, 29
    %v18 = vld [vmem:[%s17] sm:$0x1]
    %19 = vrot.lane.b32.xlu0 %v18, 116
    %v20 = vpop.permute.xlu0 %19
    %vm21 = vcmask 982944
    %22 = vst.msk [vmem:[#allocation0] sm:$0x1] %vm21, %v20
    %s23 = scalar_lea.vmem %s0, 28
    %v24 = vld [vmem:[%s23] sm:$0x1]
    %25 = vrot.lane.b32.xlu0 %v24, 112
    %v26 = vpop.permute.xlu0 %25
    %vm27 = vcmask 950144
    %28 = vst.msk [vmem:[#allocation0] sm:$0x1] %vm27, %v26
    %s29 = scalar_lea.vmem %s0, 27
    %v30 = vld [vmem:[%s29] sm:$0x1]
    %31 = vrot.lane.b32.xlu0 %v30, 108
    %v32 = vpop.permute.xlu0 %31
    %vm33 = vcmask 917344
    %34 = vst.msk [vmem:[#allocation0] sm:$0x1] %vm33, %v32
    %s35 = scalar_lea.vmem %s0, 26
    %v36 = vld [vmem:[%s35] sm:$0x1]
    %37 = vrot.lane.b32.xlu0 %v36, 104
    %v38 = vpop.permute.xlu0 %37
    %vm39 = vcmask 884544
    %40 = vst.msk [vmem:[#allocation0] sm:$0x1] %vm39, %v38
    %s41 = scalar_lea.vmem %s0, 25
    %v42 = vld [vmem:[%s41] sm:$0x1]
    %43 = vrot.lane.b32.xlu0 %v42, 100
    %v44 = vpop.permute.xlu0 %43
    %vm45 = vcmask 851744
    %46 = vst.msk [vmem:[#allocation0] sm:$0x1] %vm45, %v44
    %s47 = scalar_lea.vmem %s0, 24
    %v48 = vld [vmem:[%s47] sm:$0x1]
    %49 = vrot.lane.b32.xlu0 %v48, 96
    %v50 = vpop.permute.xlu0 %49
    %vm51 = vcmask 818944
    %52 = vst.msk [vmem:[#allocation0] sm:$0x1] %vm51, %v50
    %s53 = scalar_lea.vmem %s0, 23
    %v54 = vld [vmem:[%s53] sm:$0x1]
    %55 = vrot.lane.b32.xlu0 %v54, 92
    %v56 = vpop.permute.xlu0 %55
    %vm57 = vcmask 786144
    %58 = vst.msk [vmem:[#allocation0] sm:$0x1] %vm57, %v56
    %s59 = scalar_lea.vmem %s0, 22
    %v60 = vld [vmem:[%s59] sm:$0x1]
    %61 = vrot.lane.b32.xlu0 %v60, 88
    %v62 = vpop.permute.xlu0 %61
    %vm63 = vcmask 753344
    %64 = vst.msk [vmem:[#allocation0] sm:$0x1] %vm63, %v62
    %s65 = scalar_lea.vmem %s0, 21
    %v66 = vld [vmem:[%s65] sm:$0x1]
    %67 = vrot.lane.b32.xlu0 %v66, 84
    %v68 = vpop.permute.xlu0 %67
    %vm69 = vcmask 720544
    %70 = vst.msk [vmem:[#allocation0] sm:$0x1] %vm69, %v68
    %s71 = scalar_lea.vmem %s0, 20
    %v72 = vld [vmem:[%s71] sm:$0x1]
    %73 = vrot.lane.b32.xlu0 %v72, 80
    %v74 = vpop.permute.xlu0 %73
    %vm75 = vcmask 687744
    %76 = vst.msk [vmem:[#allocation0] sm:$0x1] %vm75, %v74
    %s77 = scalar_lea.vmem %s0, 19
    %v78 = vld [vmem:[%s77] sm:$0x1]
    %79 = vrot.lane.b32.xlu0 %v78, 76
    %v80 = vpop.permute.xlu0 %79
    %vm81 = vcmask 654944
    %82 = vst.msk [vmem:[#allocation0] sm:$0x1] %vm81, %v80
    %s83 = scalar_lea.vmem %s0, 18
    %v84 = vld [vmem:[%s83] sm:$0x1]
    %85 = vrot.lane.b32.xlu0 %v84, 72
    %v86 = vpop.permute.xlu0 %85
    %vm87 = vcmask 622144
    %88 = vst.msk [vmem:[#allocation0] sm:$0x1] %vm87, %v86
    %s89 = scalar_lea.vmem %s0, 17
    %v90 = vld [vmem:[%s89] sm:$0x1]
    %91 = vrot.lane.b32.xlu0 %v90, 68
    %v92 = vpop.permute.xlu0 %91
    %vm93 = vcmask 589344
    %94 = vst.msk [vmem:[#allocation0] sm:$0x1] %vm93, %v92
    %s95 = scalar_lea.vmem %s0, 16
    %v96 = vld [vmem:[%s95] sm:$0x1]
    %97 = vrot.lane.b32.xlu0 %v96, 64
    %v98 = vpop.permute.xlu0 %97
    %vm99 = vcmask 556544
    %100 = vst.msk [vmem:[#allocation0] sm:$0x1] %vm99, %v98
    %s101 = scalar_lea.vmem %s0, 15
    %v102 = vld [vmem:[%s101] sm:$0x1]
    %103 = vrot.lane.b32.xlu0 %v102, 60
    %v104 = vpop.permute.xlu0 %103
    %vm105 = vcmask 523744
    %106 = vst.msk [vmem:[#allocation0] sm:$0x1] %vm105, %v104
    %s107 = scalar_lea.vmem %s0, 14
    %v108 = vld [vmem:[%s107] sm:$0x1]
    %109 = vrot.lane.b32.xlu0 %v108, 56
    %v110 = vpop.permute.xlu0 %109
    %vm111 = vcmask 490944
    %112 = vst.msk [vmem:[#allocation0] sm:$0x1] %vm111, %v110
    %s113 = scalar_lea.vmem %s0, 13
    %v114 = vld [vmem:[%s113] sm:$0x1]
    %115 = vrot.lane.b32.xlu0 %v114, 52
    %v116 = vpop.permute.xlu0 %115
    %vm117 = vcmask 458144
    %118 = vst.msk [vmem:[#allocation0] sm:$0x1] %vm117, %v116
    %s119 = scalar_lea.vmem %s0, 12
    %v120 = vld [vmem:[%s119] sm:$0x1]
    %121 = vrot.lane.b32.xlu0 %v120, 48
    %v122 = vpop.permute.xlu0 %121
    %vm123 = vcmask 425344
    %124 = vst.msk [vmem:[#allocation0] sm:$0x1] %vm123, %v122
    %s125 = scalar_lea.vmem %s0, 11
    %v126 = vld [vmem:[%s125] sm:$0x1]
    %127 = vrot.lane.b32.xlu0 %v126, 44
    %v128 = vpop.permute.xlu0 %127
    %vm129 = vcmask 392544
    %130 = vst.msk [vmem:[#allocation0] sm:$0x1] %vm129, %v128
    %s131 = scalar_lea.vmem %s0, 10
    %v132 = vld [vmem:[%s131] sm:$0x1]
    %133 = vrot.lane.b32.xlu0 %v132, 40
    %v134 = vpop.permute.xlu0 %133
    %vm135 = vcmask 359744
    %136 = vst.msk [vmem:[#allocation0] sm:$0x1] %vm135, %v134
    %s137 = scalar_lea.vmem %s0, 9
    %v138 = vld [vmem:[%s137] sm:$0x1]
    %139 = vrot.lane.b32.xlu0 %v138, 36
    %v140 = vpop.permute.xlu0 %139
    %vm141 = vcmask 326944
    %142 = vst.msk [vmem:[#allocation0] sm:$0x1] %vm141, %v140
    %s143 = scalar_lea.vmem %s0, 8
    %v144 = vld [vmem:[%s143] sm:$0x1]
    %145 = vrot.lane.b32.xlu0 %v144, 32
    %v146 = vpop.permute.xlu0 %145
    %vm147 = vcmask 294144
    %148 = vst.msk [vmem:[#allocation0] sm:$0x1] %vm147, %v146
    %s149 = scalar_lea.vmem %s0, 7
    %v150 = vld [vmem:[%s149] sm:$0x1]
    %151 = vrot.lane.b32.xlu0 %v150, 28
    %v152 = vpop.permute.xlu0 %151
    %vm153 = vcmask 261344
    %154 = vst.msk [vmem:[#allocation0] sm:$0x1] %vm153, %v152
    %s155 = scalar_lea.vmem %s0, 6
    %v156 = vld [vmem:[%s155] sm:$0x1]
    %157 = vrot.lane.b32.xlu0 %v156, 24
    %v158 = vpop.permute.xlu0 %157
    %vm159 = vcmask 228544
    %160 = vst.msk [vmem:[#allocation0] sm:$0x1] %vm159, %v158
    %s161 = scalar_lea.vmem %s0, 5
    %v162 = vld [vmem:[%s161] sm:$0x1]
    %163 = vrot.lane.b32.xlu0 %v162, 20
    %v164 = vpop.permute.xlu0 %163
    %vm165 = vcmask 195744
    %166 = vst.msk [vmem:[#allocation0] sm:$0x1] %vm165, %v164
    %s167 = scalar_lea.vmem %s0, 4
    %v168 = vld [vmem:[%s167] sm:$0x1]
    %169 = vrot.lane.b32.xlu0 %v168, 16
    %v170 = vpop.permute.xlu0 %169
    %vm171 = vcmask 162944
    %172 = vst.msk [vmem:[#allocation0] sm:$0x1] %vm171, %v170
    %s173 = scalar_lea.vmem %s0, 3
    %v174 = vld [vmem:[%s173] sm:$0x1]
    %175 = vrot.lane.b32.xlu0 %v174, 12
    %v176 = vpop.permute.xlu0 %175
    %vm177 = vcmask 130144
    %178 = vst.msk [vmem:[#allocation0] sm:$0x1] %vm177, %v176
    %s179 = scalar_lea.vmem %s0, 2
    %v180 = vld [vmem:[%s179] sm:$0x1]
    %181 = vrot.lane.b32.xlu0 %v180, 8
    %v182 = vpop.permute.xlu0 %181
    %vm183 = vcmask 97344
    %184 = vst.msk [vmem:[#allocation0] sm:$0x1] %vm183, %v182
    %s185 = scalar_lea.vmem %s0, 1
    %v186 = vld [vmem:[%s185] sm:$0x1]
    %187 = vrot.lane.b32.xlu0 %v186, 4
    %v188 = vpop.permute.xlu0 %187
    %vm189 = vcmask 64544
    %190 = vst.msk [vmem:[#allocation0] sm:$0x1] %vm189, %v188
    %s192 = ssub.s32 2, 1
    %v193 = vld [vmem:[#allocation0] sm:%s192]
    %s195 = ssub.s32 2, 1
    %196 = vst [vmem:[%s1] sm:%s195] %v193

// kernel: tile.34
$region0: #{tile.34}
  #allocation0 [shape = 's32[1]{0}', space=sflag, size = 0x4, scoped, tag = 'scoped memory for tile.34']
  %s0 = inlined_call_operand.vmem [shape: f32[128], index: 0, kind: input, shape index: {}]
  %s1 = inlined_call_operand.vmem [shape: f32[2,128], index: 1, kind: output, shape index: {}]
  // Predicated region
  $region2: #{tile.34} parent=0 // pred_check
    _
  $region3: #{tile.34} parent=0 // pred_check_branch
    %3 = sbr.rel (0) target = $region5
  $region4: #{tile.34} parent=0 // pred_region
    _
  $region5: #{tile.34} parent=0 // pred_fallthru
    _
  %v4 = vld [vmem:[%s0] ss:$0 sm:$0xff]
  %5 = vst [vmem:[%s1] sm:$0x3] %v4

// kernel: tile.25
$region0: #{tile.25}
  %s0 = inlined_call_operand.vmem [shape: f32[16,16], index: 0, kind: input, shape index: {}]
  %s1 = inlined_call_operand.vmem [shape: f32[256], index: 1, kind: output, shape index: {}]
  $region1: #{tile.25} parent=0
    #allocation0 [shape = 'u8[4096]{0}', space=vmem, size = 0x1000, scoped, tag = 'scoped mem for output reshape']
    %s2 = smov 3
    %v3 = vld [vmem:[%s0] ss:$8 sm:%s2]
    %vm4 = vcmask 130048
    %5 = vst.msk [vmem:[#allocation0] sm:$0x3] %vm4, %v3
    %s6 = scalar_lea.vmem %s0, 7
    %s7 = smov 3
    %v8 = vld [vmem:[%s6] ss:$8 sm:%s7]
    %9 = vrot.lane.b32.xlu0 %v8, 112
    %v10 = vpop.permute.xlu0 %9
    %vm11 = vcmask 1048448
    %12 = vst.msk [vmem:[#allocation0] sm:$0x3] %vm11, %v10
    %s13 = scalar_lea.vmem %s0, 6
    %s14 = smov 3
    %v15 = vld [vmem:[%s13] ss:$8 sm:%s14]
    %16 = vrot.lane.b32.xlu0 %v15, 96
    %v17 = vpop.permute.xlu0 %16
    %vm18 = vcmask 917248
    %19 = vst.msk [vmem:[#allocation0] sm:$0x3] %vm18, %v17
    %s20 = scalar_lea.vmem %s0, 5
    %s21 = smov 3
    %v22 = vld [vmem:[%s20] ss:$8 sm:%s21]
    %23 = vrot.lane.b32.xlu0 %v22, 80
    %v24 = vpop.permute.xlu0 %23
    %vm25 = vcmask 786048
    %26 = vst.msk [vmem:[#allocation0] sm:$0x3] %vm25, %v24
    %s27 = scalar_lea.vmem %s0, 4
    %s28 = smov 3
    %v29 = vld [vmem:[%s27] ss:$8 sm:%s28]
    %30 = vrot.lane.b32.xlu0 %v29, 64
    %v31 = vpop.permute.xlu0 %30
    %vm32 = vcmask 654848
    %33 = vst.msk [vmem:[#allocation0] sm:$0x3] %vm32, %v31
    %s34 = scalar_lea.vmem %s0, 3
    %s35 = smov 3
    %v36 = vld [vmem:[%s34] ss:$8 sm:%s35]
    %37 = vrot.lane.b32.xlu0 %v36, 48
    %v38 = vpop.permute.xlu0 %37
    %vm39 = vcmask 523648
    %40 = vst.msk [vmem:[#allocation0] sm:$0x3] %vm39, %v38
    %s41 = scalar_lea.vmem %s0, 2
    %s42 = smov 3
    %v43 = vld [vmem:[%s41] ss:$8 sm:%s42]
    %44 = vrot.lane.b32.xlu0 %v43, 32
    %v45 = vpop.permute.xlu0 %44
    %vm46 = vcmask 392448
    %47 = vst.msk [vmem:[#allocation0] sm:$0x3] %vm46, %v45
    %s48 = scalar_lea.vmem %s0, 1
    %s49 = smov 3
    %v50 = vld [vmem:[%s48] ss:$8 sm:%s49]
    %51 = vrot.lane.b32.xlu0 %v50, 16
    %v52 = vpop.permute.xlu0 %51
    %vm53 = vcmask 261248
    %54 = vst.msk [vmem:[#allocation0] sm:$0x3] %vm53, %v52
    %s56 = ssub.s32 4, 1
    %v57 = vld [vmem:[#allocation0] sm:%s56]
    %s59 = ssub.s32 4, 1
    %60 = vst [vmem:[%s1] sm:%s59] %v57

// kernel: tile.42
$region0: #{tile.42}
  #allocation0 [shape = 's32[1]{0}', space=sflag, size = 0x4, scoped, tag = 'scoped memory for tile.42']
  %s0 = inlined_call_operand.vmem [shape: f32[64], index: 0, kind: input, shape index: {}]
  %s1 = inlined_call_operand.vmem [shape: f32[2,64], index: 1, kind: output, shape index: {}]
  // Predicated region
  $region2: #{tile.42} parent=0 // pred_check
    _
  $region3: #{tile.42} parent=0 // pred_check_branch
    %3 = sbr.rel (0) target = $region5
  $region4: #{tile.42} parent=0 // pred_region
    _
  $region5: #{tile.42} parent=0 // pred_fallthru
    _
  %v4 = vld [vmem:[%s0] ss:$0 sm:$0xff]
  %5 = vst [vmem:[%s1] sm:$0x3] %v4

// kernel: tile.46
$region0: #{tile.46}
  %s0 = inlined_call_operand.vmem [shape: f32[2,64], index: 0, kind: input, shape index: {}]
  %s1 = inlined_call_operand.vmem [shape: f32[1,128], index: 1, kind: output, shape index: {}]
  $region1: #{tile.46} parent=0
    #allocation0 [shape = 'u8[4096]{0}', space=vmem, size = 0x1000, scoped, tag = 'scoped mem for output reshape']
    #allocation1 [shape = 'u8[4096]{0}', space=vmem, size = 0x1000, scoped, tag = 'scoped mem for input reshape']
    %s3 = ssub.s32 4, 1
    %v4 = vld [vmem:[%s0] sm:%s3]
    %5 = vst [vmem:[#allocation1] sm:%s3] %v4
    %v6 = vld [vmem:[#allocation1] sm:$0x1]
    %vm7 = vcmask 523264
    %8 = vst.msk [vmem:[#allocation0] sm:$0x1] %vm7, %v6
    %s9 = scalar_lea.vmem [#allocation1], 1
    %v10 = vld [vmem:[%s9] sm:$0x1]
    %11 = vrot.lane.b32.xlu0 %v10, 64
    %v12 = vpop.permute.xlu0 %11
    %vm13 = vcmask 1048064
    %14 = vst.msk [vmem:[#allocation0] sm:$0x1] %vm13, %v12
    %s16 = ssub.s32 2, 1
    %v17 = vld [vmem:[#allocation0] sm:%s16]
    %s19 = ssub.s32 2, 1
    %20 = vst [vmem:[%s1] sm:%s19] %v17

// kernel: conv1dcnn_forward.1
$region0: #{conv1dcnn_forward.1}
  #allocation0 [shape = 'u32[]', space=smem, size = 0x4, offset = 0x4, fixed_abs, tag = 'smem constant byte address 0x4 - core index']
  #allocation1 [shape = 'u32[72,128]{1,0:T(1,128)}', space=vmem, size = 0x9000, scoped, tag = 'internal scratch']
  %s0 = inlined_call_operand.vmem [shape: bf16[8,64], index: 0, kind: input, shape index: {}]
  %s1 = inlined_call_operand.vmem [shape: bf16[64,512], index: 1, kind: input, shape index: {}]
  %s2 = inlined_call_operand.vmem [shape: f32[2,512], index: 2, kind: input, shape index: {}]
  %s3 = inlined_call_operand.vmem [shape: bf16[256,256], index: 3, kind: input, shape index: {}]
  %s4 = inlined_call_operand.vmem [shape: f32[2,256], index: 4, kind: input, shape index: {}]
  %s5 = inlined_call_operand.vmem [shape: bf16[128,128], index: 5, kind: input, shape index: {}]
  %s6 = inlined_call_operand.vmem [shape: f32[2,128], index: 6, kind: input, shape index: {}]
  %s7 = inlined_call_operand.vmem [shape: bf16[64,256], index: 7, kind: input, shape index: {}]
  %s8 = inlined_call_operand.vmem [shape: f32[1,256], index: 8, kind: input, shape index: {}]
  %s9 = inlined_call_operand.vmem [shape: bf16[256,128], index: 9, kind: input, shape index: {}]
  %s10 = inlined_call_operand.vmem [shape: f32[1,128], index: 10, kind: input, shape index: {}]
  %s11 = inlined_call_operand.vmem [shape: f32[8,128], index: 11, kind: output, shape index: {}]
  %s12 = sld [smem:[#allocation0]]
  $region54: #{conv1dcnn_forward.1} parent=0
    _
  %s14 = ssub.s32 1, %s12
  %s15 = scalar_select 0, %s14, %s12
  // Predicated region
  $region2: #{conv1dcnn_forward.1} parent=0 // pred_check
    _
  $region3: #{conv1dcnn_forward.1} parent=0 // pred_check_branch
    %17 = sbr.rel (0) target = $region5
  $region4: #{conv1dcnn_forward.1} parent=0 // pred_region
    _
  $region5: #{conv1dcnn_forward.1} parent=0 // pred_fallthru
    _
  // Predicated region
  $region6: #{conv1dcnn_forward.1} parent=0 // pred_check
    _
  $region7: #{conv1dcnn_forward.1} parent=0 // pred_check_branch
    %19 = sbr.rel (0) target = $region9
  $region8: #{conv1dcnn_forward.1} parent=0 // pred_region
    _
  $region9: #{conv1dcnn_forward.1} parent=0 // pred_fallthru
    _
  // Predicated region
  $region10: #{conv1dcnn_forward.1} parent=0 // pred_check
    _
  $region11: #{conv1dcnn_forward.1} parent=0 // pred_check_branch
    %21 = sbr.rel (0) target = $region13
  $region12: #{conv1dcnn_forward.1} parent=0 // pred_region
    _
  $region13: #{conv1dcnn_forward.1} parent=0 // pred_fallthru
    _
  // Predicated region
  $region14: #{conv1dcnn_forward.1} parent=0 // pred_check
    _
  $region15: #{conv1dcnn_forward.1} parent=0 // pred_check_branch
    %23 = sbr.rel (0) target = $region17
  $region16: #{conv1dcnn_forward.1} parent=0 // pred_region
    _
  $region17: #{conv1dcnn_forward.1} parent=0 // pred_fallthru
    _
  // Predicated region
  $region18: #{conv1dcnn_forward.1} parent=0 // pred_check
    _
  $region19: #{conv1dcnn_forward.1} parent=0 // pred_check_branch
    %25 = sbr.rel (0) target = $region21
  $region20: #{conv1dcnn_forward.1} parent=0 // pred_region
    _
  $region21: #{conv1dcnn_forward.1} parent=0 // pred_fallthru
    _
  // Predicated region
  $region22: #{conv1dcnn_forward.1} parent=0 // pred_check
    _
  $region23: #{conv1dcnn_forward.1} parent=0 // pred_check_branch
    %27 = sbr.rel (0) target = $region25
  $region24: #{conv1dcnn_forward.1} parent=0 // pred_region
    _
  $region25: #{conv1dcnn_forward.1} parent=0 // pred_fallthru
    _
  // Predicated region
  $region26: #{conv1dcnn_forward.1} parent=0 // pred_check
    _
  $region27: #{conv1dcnn_forward.1} parent=0 // pred_check_branch
    %29 = sbr.rel (0) target = $region29
  $region28: #{conv1dcnn_forward.1} parent=0 // pred_region
    _
  $region29: #{conv1dcnn_forward.1} parent=0 // pred_fallthru
    _
  // Predicated region
  $region30: #{conv1dcnn_forward.1} parent=0 // pred_check
    _
  $region31: #{conv1dcnn_forward.1} parent=0 // pred_check_branch
    %31 = sbr.rel (0) target = $region33
  $region32: #{conv1dcnn_forward.1} parent=0 // pred_region
    _
  $region33: #{conv1dcnn_forward.1} parent=0 // pred_fallthru
    _
  // Predicated region
  $region34: #{conv1dcnn_forward.1} parent=0 // pred_check
    _
  $region35: #{conv1dcnn_forward.1} parent=0 // pred_check_branch
    %33 = sbr.rel (0) target = $region37
  $region36: #{conv1dcnn_forward.1} parent=0 // pred_region
    _
  $region37: #{conv1dcnn_forward.1} parent=0 // pred_fallthru
    _
  // Predicated region
  $region38: #{conv1dcnn_forward.1} parent=0 // pred_check
    _
  $region39: #{conv1dcnn_forward.1} parent=0 // pred_check_branch
    %35 = sbr.rel (0) target = $region41
  $region40: #{conv1dcnn_forward.1} parent=0 // pred_region
    _
  $region41: #{conv1dcnn_forward.1} parent=0 // pred_fallthru
    _
  // Predicated region
  $region42: #{conv1dcnn_forward.1} parent=0 // pred_check
    _
  $region43: #{conv1dcnn_forward.1} parent=0 // pred_check_branch
    %37 = sbr.rel (0) target = $region45
  $region44: #{conv1dcnn_forward.1} parent=0 // pred_region
    _
  $region45: #{conv1dcnn_forward.1} parent=0 // pred_fallthru
    _
  %v39 = vld [vmem:[%s0] sm:$0xf]
  %v40 = vld [vmem:[%s1] sm:$0xff]
  %v41 = vld [vmem:[%s1 + $0x8] sm:$0xff]
  %v42 = vld [vmem:[%s1 + $0x10] sm:$0xff]
  %v43 = vld [vmem:[%s1 + $0x18] sm:$0xff]
  %v44 = vld [vmem:[%s1 + $0x20] sm:$0xff]
  %v45 = vld [vmem:[%s1 + $0x28] sm:$0xff]
  %v46 = vld [vmem:[%s1 + $0x30] sm:$0xff]
  %v47 = vld [vmem:[%s1 + $0x38] sm:$0xff]
  %v48 = vld [vmem:[%s1 + $0x40] sm:$0xff]
  %v49 = vld [vmem:[%s1 + $0x48] sm:$0xff]
  %v50 = vld [vmem:[%s1 + $0x50] sm:$0xff]
  %v51 = vld [vmem:[%s1 + $0x58] sm:$0xff]
  %v52 = vld [vmem:[%s1 + $0x60] sm:$0xff]
  %v53 = vld [vmem:[%s1 + $0x68] sm:$0xff]
  %v54 = vld [vmem:[%s1 + $0x70] sm:$0xff]
  %v55 = vld [vmem:[%s1 + $0x78] sm:$0xff]
  %v72 = vunpack.c.l.b16 %v40
  %v73 = vunpack.c.h.b16 %v40
  %v74 = vunpack.c.l.b16 %v41
  %v75 = vunpack.c.h.b16 %v41
  %v76 = vunpack.c.l.b16 %v42
  %v77 = vunpack.c.h.b16 %v42
  %v78 = vunpack.c.l.b16 %v43
  %v79 = vunpack.c.h.b16 %v43
  %v80 = vunpack.c.l.b16 %v44
  %v81 = vunpack.c.h.b16 %v44
  %v82 = vunpack.c.l.b16 %v45
  %v83 = vunpack.c.h.b16 %v45
  %v84 = vunpack.c.l.b16 %v46
  %v85 = vunpack.c.h.b16 %v46
  %v86 = vunpack.c.l.b16 %v47
  %v87 = vunpack.c.h.b16 %v47
  %v88 = vunpack.c.l.b16 %v48
  %v89 = vunpack.c.h.b16 %v48
  %v90 = vunpack.c.l.b16 %v49
  %v91 = vunpack.c.h.b16 %v49
  %v92 = vunpack.c.l.b16 %v50
  %v93 = vunpack.c.h.b16 %v50
  %v94 = vunpack.c.l.b16 %v51
  %v95 = vunpack.c.h.b16 %v51
  %v96 = vunpack.c.l.b16 %v52
  %v97 = vunpack.c.h.b16 %v52
  %v98 = vunpack.c.l.b16 %v53
  %v99 = vunpack.c.h.b16 %v53
  %v100 = vunpack.c.l.b16 %v54
  %v101 = vunpack.c.h.b16 %v54
  %v102 = vunpack.c.l.b16 %v55
  %v103 = vunpack.c.h.b16 %v55
  %v104 = vpack.c.b16 %v76, %v72
  %v105 = vpack.c.b16 %v77, %v73
  %v106 = vpack.c.b16 %v78, %v74
  %v107 = vpack.c.b16 %v79, %v75
  %v108 = vpack.c.b16 %v84, %v80
  %v109 = vpack.c.b16 %v85, %v81
  %v110 = vpack.c.b16 %v86, %v82
  %v111 = vpack.c.b16 %v87, %v83
  %v112 = vpack.c.b16 %v92, %v88
  %v113 = vpack.c.b16 %v93, %v89
  %v114 = vpack.c.b16 %v94, %v90
  %v115 = vpack.c.b16 %v95, %v91
  %v116 = vpack.c.b16 %v100, %v96
  %v117 = vpack.c.b16 %v101, %v97
  %v118 = vpack.c.b16 %v102, %v98
  %v119 = vpack.c.b16 %v103, %v99
  %vm136 = vcmask 523264
  %v138 = vsel %vm136, %v39, 0
  %140 = vmatpush.bf16.msra.mxu0 0
  %141 = vmatpush.bf16.msra.mxu0 0
  %142 = vmatpush.bf16.msra.mxu0 0
  %143 = vmatpush.bf16.msra.mxu0 0
  %144 = vmatpush.bf16.msra.mxu0 %v116
  %145 = vmatpush.bf16.msra.mxu0 %v112
  %146 = vmatpush.bf16.msra.mxu0 %v108
  %147 = vmatpush.bf16.msra.mxu0 %v104
  %148 = vmatmul.bf16.gmra.mxu0 %v138
  %v149 = vpop.f32.mrf.mxu0
  %v150 = vadd.f32 0.0, %v149
  %v151 = vpop.f32.mrf.mxu0
  %152 = vdwg.mxu0
  %153 = vmatpush.bf16.msra.mxu0 0
  %154 = vmatpush.bf16.msra.mxu0 0
  %155 = vmatpush.bf16.msra.mxu0 0
  %156 = vmatpush.bf16.msra.mxu0 0
  %157 = vmatpush.bf16.msra.mxu0 %v117
  %158 = vmatpush.bf16.msra.mxu0 %v113
  %159 = vmatpush.bf16.msra.mxu0 %v109
  %160 = vmatpush.bf16.msra.mxu0 %v105
  %161 = vmatmul.bf16.gmra.mxu0 %v138
  %v162 = vpop.f32.mrf.mxu0
  %v163 = vadd.f32 0.0, %v162
  %v164 = vpop.f32.mrf.mxu0
  %165 = vdwg.mxu0
  %166 = vmatpush.bf16.msra.mxu0 0
  %167 = vmatpush.bf16.msra.mxu0 0
  %168 = vmatpush.bf16.msra.mxu0 0
  %169 = vmatpush.bf16.msra.mxu0 0
  %170 = vmatpush.bf16.msra.mxu0 %v118
  %171 = vmatpush.bf16.msra.mxu0 %v114
  %172 = vmatpush.bf16.msra.mxu0 %v110
  %173 = vmatpush.bf16.msra.mxu0 %v106
  %174 = vmatmul.bf16.gmra.mxu0 %v138
  %v175 = vpop.f32.mrf.mxu0
  %v176 = vadd.f32 0.0, %v175
  %v177 = vpop.f32.mrf.mxu0
  %178 = vdwg.mxu0
  %179 = vmatpush.bf16.msra.mxu0 0
  %180 = vmatpush.bf16.msra.mxu0 0
  %181 = vmatpush.bf16.msra.mxu0 0
  %182 = vmatpush.bf16.msra.mxu0 0
  %183 = vmatpush.bf16.msra.mxu0 %v119
  %184 = vmatpush.bf16.msra.mxu0 %v115
  %185 = vmatpush.bf16.msra.mxu0 %v111
  %186 = vmatpush.bf16.msra.mxu0 %v107
  %187 = vmatmul.bf16.gmra.mxu0 %v138
  %v188 = vpop.f32.mrf.mxu0
  %v189 = vadd.f32 0.0, %v188
  %v190 = vpop.f32.mrf.mxu0
  %191 = vdwg.mxu0
  %v192 = vld [vmem:[%s2] ss:$2 sm:$0xf]
  %v194 = vperm.slane %v192, 0
  %v195 = vperm.slane %v192, 1
  %v196 = vperm.slane %v192, 2
  %v197 = vperm.slane %v192, 3
  %v202 = vmul.f32 %v150, %v194
  %v203 = vmul.f32 %v163, %v195
  %v204 = vmul.f32 %v176, %v196
  %v205 = vmul.f32 %v189, %v197
  %s206 = scalar_lea.vmem %s2, 1
  %v207 = vld [vmem:[%s206] ss:$2 sm:$0xf]
  %v209 = vperm.slane %v207, 0
  %v210 = vperm.slane %v207, 1
  %v211 = vperm.slane %v207, 2
  %v212 = vperm.slane %v207, 3
  %v217 = vadd.f32 %v202, %v209
  %v218 = vadd.f32 %v203, %v210
  %v219 = vadd.f32 %v204, %v211
  %v220 = vadd.f32 %v205, %v212
  %v221 = vmax.f32 %v217, 0.0
  %v222 = vmax.f32 %v218, 0.0
  %v223 = vmax.f32 %v219, 0.0
  %v224 = vmax.f32 %v220, 0.0
  %v225 = vmax.f32 %v221, %v223
  %v226 = vmax.f32 %v222, %v224
  %v227 = vpack.c.bf16 %v225, %v225
  %v228 = vpack.c.bf16 %v226, %v226
  %v229 = vld [vmem:[%s3] sm:$0xff]
  %v230 = vld [vmem:[%s3 + $0x8] sm:$0xff]
  %v231 = vld [vmem:[%s3 + $0x10] sm:$0xff]
  %v232 = vld [vmem:[%s3 + $0x18] sm:$0xff]
  %v233 = vld [vmem:[%s3 + $0x20] sm:$0xff]
  %v234 = vld [vmem:[%s3 + $0x28] sm:$0xff]
  %v235 = vld [vmem:[%s3 + $0x30] sm:$0xff]
  %v236 = vld [vmem:[%s3 + $0x38] sm:$0xff]
  %v237 = vld [vmem:[%s3 + $0x40] sm:$0xff]
  %v238 = vld [vmem:[%s3 + $0x48] sm:$0xff]
  %v239 = vld [vmem:[%s3 + $0x50] sm:$0xff]
  %v240 = vld [vmem:[%s3 + $0x58] sm:$0xff]
  %v241 = vld [vmem:[%s3 + $0x60] sm:$0xff]
  %v242 = vld [vmem:[%s3 + $0x68] sm:$0xff]
  %v243 = vld [vmem:[%s3 + $0x70] sm:$0xff]
  %v244 = vld [vmem:[%s3 + $0x78] sm:$0xff]
  %v245 = vld [vmem:[%s3 + $0x80] sm:$0xff]
  %v246 = vld [vmem:[%s3 + $0x88] sm:$0xff]
  %v247 = vld [vmem:[%s3 + $0x90] sm:$0xff]
  %v248 = vld [vmem:[%s3 + $0x98] sm:$0xff]
  %v249 = vld [vmem:[%s3 + $0xa0] sm:$0xff]
  %v250 = vld [vmem:[%s3 + $0xa8] sm:$0xff]
  %v251 = vld [vmem:[%s3 + $0xb0] sm:$0xff]
  %v252 = vld [vmem:[%s3 + $0xb8] sm:$0xff]
  %v253 = vld [vmem:[%s3 + $0xc0] sm:$0xff]
  %v254 = vld [vmem:[%s3 + $0xc8] sm:$0xff]
  %v255 = vld [vmem:[%s3 + $0xd0] sm:$0xff]
  %v256 = vld [vmem:[%s3 + $0xd8] sm:$0xff]
  %v257 = vld [vmem:[%s3 + $0xe0] sm:$0xff]
  %v258 = vld [vmem:[%s3 + $0xe8] sm:$0xff]
  %v259 = vld [vmem:[%s3 + $0xf0] sm:$0xff]
  %v260 = vld [vmem:[%s3 + $0xf8] sm:$0xff]
  %v293 = vunpack.c.l.b16 %v229
  %v294 = vunpack.c.h.b16 %v229
  %v295 = vunpack.c.l.b16 %v230
  %v296 = vunpack.c.h.b16 %v230
  %v297 = vunpack.c.l.b16 %v231
  %v298 = vunpack.c.h.b16 %v231
  %v299 = vunpack.c.l.b16 %v232
  %v300 = vunpack.c.h.b16 %v232
  %v301 = vunpack.c.l.b16 %v233
  %v302 = vunpack.c.h.b16 %v233
  %v303 = vunpack.c.l.b16 %v234
  %v304 = vunpack.c.h.b16 %v234
  %v305 = vunpack.c.l.b16 %v235
  %v306 = vunpack.c.h.b16 %v235
  %v307 = vunpack.c.l.b16 %v236
  %v308 = vunpack.c.h.b16 %v236
  %v309 = vunpack.c.l.b16 %v237
  %v310 = vunpack.c.h.b16 %v237
  %v311 = vunpack.c.l.b16 %v238
  %v312 = vunpack.c.h.b16 %v238
  %v313 = vunpack.c.l.b16 %v239
  %v314 = vunpack.c.h.b16 %v239
  %v315 = vunpack.c.l.b16 %v240
  %v316 = vunpack.c.h.b16 %v240
  %v317 = vunpack.c.l.b16 %v241
  %v318 = vunpack.c.h.b16 %v241
  %v319 = vunpack.c.l.b16 %v242
  %v320 = vunpack.c.h.b16 %v242
  %v321 = vunpack.c.l.b16 %v243
  %v322 = vunpack.c.h.b16 %v243
  %v323 = vunpack.c.l.b16 %v244
  %v324 = vunpack.c.h.b16 %v244
  %v325 = vunpack.c.l.b16 %v245
  %v326 = vunpack.c.h.b16 %v245
  %v327 = vunpack.c.l.b16 %v246
  %v328 = vunpack.c.h.b16 %v246
  %v329 = vunpack.c.l.b16 %v247
  %v330 = vunpack.c.h.b16 %v247
  %v331 = vunpack.c.l.b16 %v248
  %v332 = vunpack.c.h.b16 %v248
  %v333 = vunpack.c.l.b16 %v249
  %v334 = vunpack.c.h.b16 %v249
  %v335 = vunpack.c.l.b16 %v250
  %v336 = vunpack.c.h.b16 %v250
  %v337 = vunpack.c.l.b16 %v251
  %v338 = vunpack.c.h.b16 %v251
  %v339 = vunpack.c.l.b16 %v252
  %v340 = vunpack.c.h.b16 %v252
  %v341 = vunpack.c.l.b16 %v253
  %v342 = vunpack.c.h.b16 %v253
  %v343 = vunpack.c.l.b16 %v254
  %v344 = vunpack.c.h.b16 %v254
  %v345 = vunpack.c.l.b16 %v255
  %v346 = vunpack.c.h.b16 %v255
  %v347 = vunpack.c.l.b16 %v256
  %v348 = vunpack.c.h.b16 %v256
  %v349 = vunpack.c.l.b16 %v257
  %v350 = vunpack.c.h.b16 %v257
  %v351 = vunpack.c.l.b16 %v258
  %v352 = vunpack.c.h.b16 %v258
  %v353 = vunpack.c.l.b16 %v259
  %v354 = vunpack.c.h.b16 %v259
  %v355 = vunpack.c.l.b16 %v260
  %v356 = vunpack.c.h.b16 %v260
  %v357 = vpack.c.b16 %v295, %v293
  %v358 = vpack.c.b16 %v296, %v294
  %v359 = vpack.c.b16 %v299, %v297
  %v360 = vpack.c.b16 %v300, %v298
  %v361 = vpack.c.b16 %v303, %v301
  %v362 = vpack.c.b16 %v304, %v302
  %v363 = vpack.c.b16 %v307, %v305
  %v364 = vpack.c.b16 %v308, %v306
  %v365 = vpack.c.b16 %v311, %v309
  %v366 = vpack.c.b16 %v312, %v310
  %v367 = vpack.c.b16 %v315, %v313
  %v368 = vpack.c.b16 %v316, %v314
  %v369 = vpack.c.b16 %v319, %v317
  %v370 = vpack.c.b16 %v320, %v318
  %v371 = vpack.c.b16 %v323, %v321
  %v372 = vpack.c.b16 %v324, %v322
  %v373 = vpack.c.b16 %v327, %v325
  %v374 = vpack.c.b16 %v328, %v326
  %v375 = vpack.c.b16 %v331, %v329
  %v376 = vpack.c.b16 %v332, %v330
  %v377 = vpack.c.b16 %v335, %v333
  %v378 = vpack.c.b16 %v336, %v334
  %v379 = vpack.c.b16 %v339, %v337
  %v380 = vpack.c.b16 %v340, %v338
  %v381 = vpack.c.b16 %v343, %v341
  %v382 = vpack.c.b16 %v344, %v342
  %v383 = vpack.c.b16 %v347, %v345
  %v384 = vpack.c.b16 %v348, %v346
  %v385 = vpack.c.b16 %v351, %v349
  %v386 = vpack.c.b16 %v352, %v350
  %v387 = vpack.c.b16 %v355, %v353
  %v388 = vpack.c.b16 %v356, %v354
  %421 = vmatpush.bf16.msra.mxu0 %v371
  %422 = vmatpush.bf16.msra.mxu0 %v369
  %423 = vmatpush.bf16.msra.mxu0 %v367
  %424 = vmatpush.bf16.msra.mxu0 %v365
  %425 = vmatpush.bf16.msra.mxu0 %v363
  %426 = vmatpush.bf16.msra.mxu0 %v361
  %427 = vmatpush.bf16.msra.mxu0 %v359
  %428 = vmatpush.bf16.msra.mxu0 %v357
  %429 = vmatmul.bf16.gmra.mxu0 %v227
  %v430 = vpop.f32.mrf.mxu0
  %v431 = vadd.f32 0.0, %v430
  %v432 = vpop.f32.mrf.mxu0
  %433 = vdwg.mxu0
  %434 = vmatpush.bf16.msra.mxu0 %v387
  %435 = vmatpush.bf16.msra.mxu0 %v385
  %436 = vmatpush.bf16.msra.mxu0 %v383
  %437 = vmatpush.bf16.msra.mxu0 %v381
  %438 = vmatpush.bf16.msra.mxu0 %v379
  %439 = vmatpush.bf16.msra.mxu0 %v377
  %440 = vmatpush.bf16.msra.mxu0 %v375
  %441 = vmatpush.bf16.msra.mxu0 %v373
  %442 = vmatmul.bf16.gmra.mxu0 %v228
  %v443 = vpop.f32.mrf.mxu0
  %v444 = vadd.f32 %v431, %v443
  %v445 = vpop.f32.mrf.mxu0
  %446 = vdwg.mxu0
  %447 = vmatpush.bf16.msra.mxu0 %v372
  %448 = vmatpush.bf16.msra.mxu0 %v370
  %449 = vmatpush.bf16.msra.mxu0 %v368
  %450 = vmatpush.bf16.msra.mxu0 %v366
  %451 = vmatpush.bf16.msra.mxu0 %v364
  %452 = vmatpush.bf16.msra.mxu0 %v362
  %453 = vmatpush.bf16.msra.mxu0 %v360
  %454 = vmatpush.bf16.msra.mxu0 %v358
  %455 = vmatmul.bf16.gmra.mxu0 %v227
  %v456 = vpop.f32.mrf.mxu0
  %v457 = vadd.f32 0.0, %v456
  %v458 = vpop.f32.mrf.mxu0
  %459 = vdwg.mxu0
  %460 = vmatpush.bf16.msra.mxu0 %v388
  %461 = vmatpush.bf16.msra.mxu0 %v386
  %462 = vmatpush.bf16.msra.mxu0 %v384
  %463 = vmatpush.bf16.msra.mxu0 %v382
  %464 = vmatpush.bf16.msra.mxu0 %v380
  %465 = vmatpush.bf16.msra.mxu0 %v378
  %466 = vmatpush.bf16.msra.mxu0 %v376
  %467 = vmatpush.bf16.msra.mxu0 %v374
  %468 = vmatmul.bf16.gmra.mxu0 %v228
  %v469 = vpop.f32.mrf.mxu0
  %v470 = vadd.f32 %v457, %v469
  %v471 = vpop.f32.mrf.mxu0
  %472 = vdwg.mxu0
  %v473 = vld [vmem:[%s4] ss:$2 sm:$0x3]
  %v475 = vperm.slane %v473, 0
  %v476 = vperm.slane %v473, 1
  %v479 = vmul.f32 %v444, %v475
  %v480 = vmul.f32 %v470, %v476
  %s481 = scalar_lea.vmem %s4, 1
  %v482 = vld [vmem:[%s481] ss:$2 sm:$0x3]
  %v484 = vperm.slane %v482, 0
  %v485 = vperm.slane %v482, 1
  %v488 = vadd.f32 %v479, %v484
  %v489 = vadd.f32 %v480, %v485
  %v490 = vmax.f32 %v488, 0.0
  %v491 = vmax.f32 %v489, 0.0
  %v492 = vmax.f32 %v490, %v491
  %v493 = vpack.c.bf16 %v492, %v492
  %v494 = vld [vmem:[%s5] sm:$0xf]
  %v495 = vld [vmem:[%s5 + $0x4] sm:$0xf]
  %v496 = vld [vmem:[%s5 + $0x8] sm:$0xf]
  %v497 = vld [vmem:[%s5 + $0xc] sm:$0xf]
  %v498 = vld [vmem:[%s5 + $0x10] sm:$0xf]
  %v499 = vld [vmem:[%s5 + $0x14] sm:$0xf]
  %v500 = vld [vmem:[%s5 + $0x18] sm:$0xf]
  %v501 = vld [vmem:[%s5 + $0x1c] sm:$0xf]
  %v502 = vld [vmem:[%s5 + $0x20] sm:$0xf]
  %v503 = vld [vmem:[%s5 + $0x24] sm:$0xf]
  %v504 = vld [vmem:[%s5 + $0x28] sm:$0xf]
  %v505 = vld [vmem:[%s5 + $0x2c] sm:$0xf]
  %v506 = vld [vmem:[%s5 + $0x30] sm:$0xf]
  %v507 = vld [vmem:[%s5 + $0x34] sm:$0xf]
  %v508 = vld [vmem:[%s5 + $0x38] sm:$0xf]
  %v509 = vld [vmem:[%s5 + $0x3c] sm:$0xf]
  %v526 = vunpack.c.l.b16 %v494
  %v527 = vunpack.c.l.b16 %v495
  %v528 = vunpack.c.l.b16 %v496
  %v529 = vunpack.c.l.b16 %v497
  %v530 = vunpack.c.l.b16 %v498
  %v531 = vunpack.c.l.b16 %v499
  %v532 = vunpack.c.l.b16 %v500
  %v533 = vunpack.c.l.b16 %v501
  %v534 = vunpack.c.l.b16 %v502
  %v535 = vunpack.c.l.b16 %v503
  %v536 = vunpack.c.l.b16 %v504
  %v537 = vunpack.c.l.b16 %v505
  %v538 = vunpack.c.l.b16 %v506
  %v539 = vunpack.c.l.b16 %v507
  %v540 = vunpack.c.l.b16 %v508
  %v541 = vunpack.c.l.b16 %v509
  %v542 = vpack.c.b16 %v527, %v526
  %v543 = vpack.c.b16 %v529, %v528
  %v544 = vpack.c.b16 %v531, %v530
  %v545 = vpack.c.b16 %v533, %v532
  %v546 = vpack.c.b16 %v535, %v534
  %v547 = vpack.c.b16 %v537, %v536
  %v548 = vpack.c.b16 %v539, %v538
  %v549 = vpack.c.b16 %v541, %v540
  %558 = vmatpush.bf16.msra.mxu0 %v549
  %559 = vmatpush.bf16.msra.mxu0 %v548
  %560 = vmatpush.bf16.msra.mxu0 %v547
  %561 = vmatpush.bf16.msra.mxu0 %v546
  %562 = vmatpush.bf16.msra.mxu0 %v545
  %563 = vmatpush.bf16.msra.mxu0 %v544
  %564 = vmatpush.bf16.msra.mxu0 %v543
  %565 = vmatpush.bf16.msra.mxu0 %v542
  %566 = vmatmul.bf16.gmra.mxu0 %v493
  %v567 = vpop.f32.mrf.mxu0
  %v568 = vadd.f32 0.0, %v567
  %v569 = vpop.f32.mrf.mxu0
  %570 = vdwg.mxu0
  %v571 = vld [vmem:[%s6] sm:$0x1]
  %v572 = vperm.slane %v571, 0
  %v573 = vmul.f32 %v568, %v572
  %v574 = vld [vmem:[%s6 + $0x1] sm:$0x1]
  %v575 = vperm.slane %v574, 0
  %v576 = vadd.f32 %v573, %v575
  %v577 = vmax.f32 %v576, 0.0
  %579 = vrot.lane.b32.xlu0 %v577, 64
  %v580 = vpop.permute.xlu0 %579
  %v582 = vmax.f32 %v577, %v580
  %v583 = vpack.c.bf16 %v582, %v582
  %v584 = vld [vmem:[%s7] sm:$0xff]
  %v585 = vld [vmem:[%s7 + $0x8] sm:$0xff]
  %v586 = vld [vmem:[%s7 + $0x10] sm:$0xff]
  %v587 = vld [vmem:[%s7 + $0x18] sm:$0xff]
  %v588 = vld [vmem:[%s7 + $0x20] sm:$0xff]
  %v589 = vld [vmem:[%s7 + $0x28] sm:$0xff]
  %v590 = vld [vmem:[%s7 + $0x30] sm:$0xff]
  %v591 = vld [vmem:[%s7 + $0x38] sm:$0xff]
  %v592 = vld [vmem:[%s8] sm:$0x3]
  %v594 = vperm.slane %v592, 0
  %v595 = vperm.slane %v592, 1
  %v606 = vunpack.c.l.b16 %v584
  %v607 = vunpack.c.h.b16 %v584
  %v608 = vunpack.c.l.b16 %v585
  %v609 = vunpack.c.h.b16 %v585
  %v610 = vunpack.c.l.b16 %v586
  %v611 = vunpack.c.h.b16 %v586
  %v612 = vunpack.c.l.b16 %v587
  %v613 = vunpack.c.h.b16 %v587
  %v614 = vunpack.c.l.b16 %v588
  %v615 = vunpack.c.h.b16 %v588
  %v616 = vunpack.c.l.b16 %v589
  %v617 = vunpack.c.h.b16 %v589
  %v618 = vunpack.c.l.b16 %v590
  %v619 = vunpack.c.h.b16 %v590
  %v620 = vunpack.c.l.b16 %v591
  %v621 = vunpack.c.h.b16 %v591
  %v622 = vpack.c.b16 %v608, %v606
  %v623 = vpack.c.b16 %v609, %v607
  %v624 = vpack.c.b16 %v612, %v610
  %v625 = vpack.c.b16 %v613, %v611
  %v626 = vpack.c.b16 %v616, %v614
  %v627 = vpack.c.b16 %v617, %v615
  %v628 = vpack.c.b16 %v620, %v618
  %v629 = vpack.c.b16 %v621, %v619
  %v639 = vsel %vm136, %v583, 0
  %641 = vmatpush.bf16.msra.mxu0 0
  %642 = vmatpush.bf16.msra.mxu0 0
  %643 = vmatpush.bf16.msra.mxu0 0
  %644 = vmatpush.bf16.msra.mxu0 0
  %645 = vmatpush.bf16.msra.mxu0 %v628
  %646 = vmatpush.bf16.msra.mxu0 %v626
  %647 = vmatpush.bf16.msra.mxu0 %v624
  %648 = vmatpush.bf16.msra.mxu0 %v622
  %649 = vmatmul.bf16.gmra.mxu0 %v639
  %v650 = vpop.f32.mrf.mxu0
  %v651 = vadd.f32 %v594, %v650
  %v652 = vpop.f32.mrf.mxu0
  %653 = vdwg.mxu0
  %654 = vmatpush.bf16.msra.mxu0 0
  %655 = vmatpush.bf16.msra.mxu0 0
  %656 = vmatpush.bf16.msra.mxu0 0
  %657 = vmatpush.bf16.msra.mxu0 0
  %658 = vmatpush.bf16.msra.mxu0 %v629
  %659 = vmatpush.bf16.msra.mxu0 %v627
  %660 = vmatpush.bf16.msra.mxu0 %v625
  %661 = vmatpush.bf16.msra.mxu0 %v623
  %662 = vmatmul.bf16.gmra.mxu0 %v639
  %v663 = vpop.f32.mrf.mxu0
  %v664 = vadd.f32 %v595, %v663
  %v665 = vpop.f32.mrf.mxu0
  %666 = vdwg.mxu0
  %v667 = vmax.f32 %v651, 0.0
  %v668 = vmax.f32 %v664, 0.0
  %v669 = vpack.c.bf16 %v667, %v667
  %v670 = vpack.c.bf16 %v668, %v668
  %v671 = vld [vmem:[%s9] sm:$0xf]
  %v672 = vld [vmem:[%s9 + $0x4] sm:$0xf]
  %v673 = vld [vmem:[%s9 + $0x8] sm:$0xf]
  %v674 = vld [vmem:[%s9 + $0xc] sm:$0xf]
  %v675 = vld [vmem:[%s9 + $0x10] sm:$0xf]
  %v676 = vld [vmem:[%s9 + $0x14] sm:$0xf]
  %v677 = vld [vmem:[%s9 + $0x18] sm:$0xf]
  %v678 = vld [vmem:[%s9 + $0x1c] sm:$0xf]
  %v679 = vld [vmem:[%s9 + $0x20] sm:$0xf]
  %v680 = vld [vmem:[%s9 + $0x24] sm:$0xf]
  %v681 = vld [vmem:[%s9 + $0x28] sm:$0xf]
  %v682 = vld [vmem:[%s9 + $0x2c] sm:$0xf]
  %v683 = vld [vmem:[%s9 + $0x30] sm:$0xf]
  %v684 = vld [vmem:[%s9 + $0x34] sm:$0xf]
  %v685 = vld [vmem:[%s9 + $0x38] sm:$0xf]
  %v686 = vld [vmem:[%s9 + $0x3c] sm:$0xf]
  %v687 = vld [vmem:[%s9 + $0x40] sm:$0xf]
  %v688 = vld [vmem:[%s9 + $0x44] sm:$0xf]
  %v689 = vld [vmem:[%s9 + $0x48] sm:$0xf]
  %v690 = vld [vmem:[%s9 + $0x4c] sm:$0xf]
  %v691 = vld [vmem:[%s9 + $0x50] sm:$0xf]
  %v692 = vld [vmem:[%s9 + $0x54] sm:$0xf]
  %v693 = vld [vmem:[%s9 + $0x58] sm:$0xf]
  %v694 = vld [vmem:[%s9 + $0x5c] sm:$0xf]
  %v695 = vld [vmem:[%s9 + $0x60] sm:$0xf]
  %v696 = vld [vmem:[%s9 + $0x64] sm:$0xf]
  %v697 = vld [vmem:[%s9 + $0x68] sm:$0xf]
  %v698 = vld [vmem:[%s9 + $0x6c] sm:$0xf]
  %v699 = vld [vmem:[%s9 + $0x70] sm:$0xf]
  %v700 = vld [vmem:[%s9 + $0x74] sm:$0xf]
  %v701 = vld [vmem:[%s9 + $0x78] sm:$0xf]
  %v702 = vld [vmem:[%s9 + $0x7c] sm:$0xf]
  %v703 = vld [vmem:[%s10] sm:$0x1]
  %v705 = vperm.slane %v703, 0
  %v739 = vunpack.c.l.b16 %v671
  %v740 = vunpack.c.l.b16 %v672
  %v741 = vunpack.c.l.b16 %v673
  %v742 = vunpack.c.l.b16 %v674
  %v743 = vunpack.c.l.b16 %v675
  %v744 = vunpack.c.l.b16 %v676
  %v745 = vunpack.c.l.b16 %v677
  %v746 = vunpack.c.l.b16 %v678
  %v747 = vunpack.c.l.b16 %v679
  %v748 = vunpack.c.l.b16 %v680
  %v749 = vunpack.c.l.b16 %v681
  %v750 = vunpack.c.l.b16 %v682
  %v751 = vunpack.c.l.b16 %v683
  %v752 = vunpack.c.l.b16 %v684
  %v753 = vunpack.c.l.b16 %v685
  %v754 = vunpack.c.l.b16 %v686
  %v755 = vunpack.c.l.b16 %v687
  %v756 = vunpack.c.l.b16 %v688
  %v757 = vunpack.c.l.b16 %v689
  %v758 = vunpack.c.l.b16 %v690
  %v759 = vunpack.c.l.b16 %v691
  %v760 = vunpack.c.l.b16 %v692
  %v761 = vunpack.c.l.b16 %v693
  %v762 = vunpack.c.l.b16 %v694
  %v763 = vunpack.c.l.b16 %v695
  %v764 = vunpack.c.l.b16 %v696
  %v765 = vunpack.c.l.b16 %v697
  %v766 = vunpack.c.l.b16 %v698
  %v767 = vunpack.c.l.b16 %v699
  %v768 = vunpack.c.l.b16 %v700
  %v769 = vunpack.c.l.b16 %v701
  %v770 = vunpack.c.l.b16 %v702
  %v771 = vpack.c.b16 %v740, %v739
  %v772 = vpack.c.b16 %v742, %v741
  %v773 = vpack.c.b16 %v744, %v743
  %v774 = vpack.c.b16 %v746, %v745
  %v775 = vpack.c.b16 %v748, %v747
  %v776 = vpack.c.b16 %v750, %v749
  %v777 = vpack.c.b16 %v752, %v751
  %v778 = vpack.c.b16 %v754, %v753
  %v779 = vpack.c.b16 %v756, %v755
  %v780 = vpack.c.b16 %v758, %v757
  %v781 = vpack.c.b16 %v760, %v759
  %v782 = vpack.c.b16 %v762, %v761
  %v783 = vpack.c.b16 %v764, %v763
  %v784 = vpack.c.b16 %v766, %v765
  %v785 = vpack.c.b16 %v768, %v767
  %v786 = vpack.c.b16 %v770, %v769
  %803 = vmatpush.bf16.msra.mxu0 %v778
  %804 = vmatpush.bf16.msra.mxu0 %v777
  %805 = vmatpush.bf16.msra.mxu0 %v776
  %806 = vmatpush.bf16.msra.mxu0 %v775
  %807 = vmatpush.bf16.msra.mxu0 %v774
  %808 = vmatpush.bf16.msra.mxu0 %v773
  %809 = vmatpush.bf16.msra.mxu0 %v772
  %810 = vmatpush.bf16.msra.mxu0 %v771
  %811 = vmatmul.bf16.gmra.mxu0 %v669
  %v812 = vpop.f32.mrf.mxu0
  %v813 = vadd.f32 %v705, %v812
  %v814 = vpop.f32.mrf.mxu0
  %815 = vdwg.mxu0
  %816 = vmatpush.bf16.msra.mxu0 %v786
  %817 = vmatpush.bf16.msra.mxu0 %v785
  %818 = vmatpush.bf16.msra.mxu0 %v784
  %819 = vmatpush.bf16.msra.mxu0 %v783
  %820 = vmatpush.bf16.msra.mxu0 %v782
  %821 = vmatpush.bf16.msra.mxu0 %v781
  %822 = vmatpush.bf16.msra.mxu0 %v780
  %823 = vmatpush.bf16.msra.mxu0 %v779
  %824 = vmatmul.bf16.gmra.mxu0 %v670
  %v825 = vpop.f32.mrf.mxu0
  %v826 = vadd.f32 %v813, %v825
  %v827 = vpop.f32.mrf.mxu0
  %828 = vdwg.mxu0
  %829 = vst [vmem:[%s11] sm:$0xff] %v826
  // Predicated region
  $region46: #{conv1dcnn_forward.1} parent=0 // pred_check
    _
  $region47: #{conv1dcnn_forward.1} parent=0 // pred_check_branch
    %831 = sbr.rel (0) target = $region49
  $region48: #{conv1dcnn_forward.1} parent=0 // pred_region
    _
  $region49: #{conv1dcnn_forward.1} parent=0 // pred_fallthru
    _
  // Predicated region
  $region50: #{conv1dcnn_forward.1} parent=0 // pred_check
    _
  $region51: #{conv1dcnn_forward.1} parent=0 // pred_check_branch
    %833 = sbr.rel (0) target = $region53
  $region52: #{conv1dcnn_forward.1} parent=0 // pred_region
    _
  $region53: #{conv1dcnn_forward.1} parent=0 // pred_fallthru
    _

</llo_original>
